<compile_context>
chip_gen: v7x
topology: tpu7x:2x2x1
jax: 0.10.0
libtpu: 0.0.40
codegen_flags: <defaults>
</compile_context>

<pallas_src>
import functools
import numpy as np
import jax
import jax.numpy as jnp
from jax.experimental import pallas as pl
from jax.experimental.pallas import tpu as pltpu


def _round_up(a, b):
    return ((a + b - 1) // b) * b


def _vmem_budget_bytes():
    # 75% of per-core VMEM capacity; conservative 64 MiB fallback (valid on
    # v5e / v6e / v7x) if the trace-time query is unavailable.
    cap = 64 * 1024 * 1024
    try:
        cap = int(pltpu.get_tpu_info().vmem_capacity_bytes)
    except Exception:
        pass
    return int(cap * 3 // 4)


def prepare_svd_conv1d_params(precomputed_su, v, bias, compute_dtype=jnp.bfloat16):
    """One-time weight prep (NOT in the hot path).

    precomputed_su: (nx, r) = U @ diag(S);  v: (nf, r);  bias: (nf,)
    Returns (su_p (nx, r_p) bf16, vt_p (r_p, nf) bf16, bias2 (1, nf) f32).
    Zero-padding the contraction (rank) axis to a lane multiple is exact.
    """
    nx, r = precomputed_su.shape
    nf = v.shape[0]
    r_p = _round_up(r, 128)  # dense MXU K; 128 is already a perfect fill on v5e
    su_p = jnp.pad(precomputed_su, ((0, 0), (0, r_p - r))).astype(compute_dtype)
    vt_p = jnp.pad(v.T, ((0, r_p - r), (0, 0))).astype(compute_dtype)
    bias2 = bias.reshape(1, nf).astype(jnp.float32)
    return su_p, vt_p, bias2


def _svd_conv1d_kernel(x_ref, su_ref, vt_ref, b_ref, o_ref, tmp_ref, *,
                       compute_dtype):
    # x_ref:  (tm, nx)   input rows (original dtype, cast in-kernel)
    # su_ref: (nx, r_p)  resident U @ diag(S), zero-padded columns
    # vt_ref: (r_p, tn)  V^T column tile, zero-padded rows
    # b_ref:  (1, tn)    f32 bias tile
    # o_ref:  (tm, tn)   output tile
    # tmp_ref:(tm, r_p)  f32 scratch; x @ SU computed once per row tile
    @pl.when(pl.program_id(1) == 0)
    def _():
        tmp_ref[...] = jnp.dot(x_ref[...].astype(compute_dtype), su_ref[...],
                               preferred_element_type=jnp.float32)

    out = jnp.dot(tmp_ref[...].astype(compute_dtype), vt_ref[...],
                  preferred_element_type=jnp.float32)
    o_ref[...] = (out + b_ref[...]).astype(o_ref.dtype)


def svd_conv1d(x, su_p, vt_p, bias2, *, tm=512, tn=None, out_dtype=None,
               compute_dtype=jnp.bfloat16):
    """y = (x @ SU) @ V^T + bias for x: (..., nx) -> (..., nf).

    su_p / vt_p / bias2 come from `prepare_svd_conv1d_params`.
    Pass out_dtype=jnp.bfloat16 to halve output HBM traffic if downstream allows.
    """
    orig_shape = x.shape
    nx = orig_shape[-1]
    r_p = su_p.shape[1]
    nf = vt_p.shape[1]
    if out_dtype is None:
        out_dtype = x.dtype

    x2 = x.reshape(-1, nx)
    M = x2.shape[0]

    x_bpe = jnp.dtype(x2.dtype).itemsize
    o_bpe = jnp.dtype(out_dtype).itemsize
    c_bpe = jnp.dtype(compute_dtype).itemsize

    # ---- row tile: big, but keep >= 2 row tiles for megacore sharding ------
    tm = max(8, min(int(tm), _round_up(M, 8)))
    tm = _round_up(tm, 8)
    if pl.cdiv(M, tm) < 2 and M > 8:
        tm = _round_up(pl.cdiv(M, 2), 8)

    budget = _vmem_budget_bytes()

    def vmem_needed(tn_):
        tn_lane = _round_up(tn_, 128)
        return (2 * tm * nx * x_bpe            # x tiles (double-buffered)
                + 2 * tm * tn_lane * o_bpe     # out tiles (double-buffered)
                + 2 * nx * r_p * c_bpe         # SU (resident, dbl-buffered)
                + 2 * r_p * tn_lane * c_bpe    # V^T tile
                + 2 * tn_lane * 4              # bias tile
                + tm * r_p * 4)                # f32 tmp scratch

    # ---- nf tile: prefer full residency (no per-j V^T/bias re-DMA and no
    # recomputation scheduling at all); otherwise tile in 128-lane multiples.
    if tn is None:
        if vmem_needed(nf) <= 0.6 * budget:
            tn = nf
        else:
            tn = 512
            while tn > 128 and vmem_needed(tn) > 0.6 * budget:
                tn //= 2
    else:
        tn = int(tn)
    if tn < nf:
        tn = _round_up(tn, 128)   # lane-dense stores; last j tile may overhang
    tn = min(tn, nf)

    grid = (pl.cdiv(M, tm), pl.cdiv(nf, tn))

    cost = pl.CostEstimate(
        flops=2 * M * r_p * (nx + nf),
        transcendentals=0,
        bytes_accessed=(M * nx * x_bpe + M * nf * o_bpe
                        + (nx * r_p + r_p * nf) * c_bpe + nf * 4),
    )
    vmem_limit = int(min(max(int(1.25 * vmem_needed(tn)), 32 * 1024 * 1024),
                         budget))

    kernel = functools.partial(_svd_conv1d_kernel, compute_dtype=compute_dtype)

    out = pl.pallas_call(
        kernel,
        out_shape=jax.ShapeDtypeStruct((M, nf), out_dtype),
        grid_spec=pltpu.PrefetchScalarGridSpec(
            num_scalar_prefetch=0,
            grid=grid,
            in_specs=[
                pl.BlockSpec((tm, nx), lambda i, j: (i, 0)),    # x row tile
                pl.BlockSpec((nx, r_p), lambda i, j: (0, 0)),   # SU (resident)
                pl.BlockSpec((r_p, tn), lambda i, j: (0, j)),   # V^T column tile
                pl.BlockSpec((1, tn), lambda i, j: (0, j)),     # bias column tile
            ],
            out_specs=pl.BlockSpec((tm, tn), lambda i, j: (i, j)),
            scratch_shapes=[pltpu.VMEM((tm, r_p), jnp.float32)],
        ),
        compiler_params=pltpu.CompilerParams(
            dimension_semantics=("parallel", "arbitrary"),
            vmem_limit_bytes=vmem_limit,
        ),
        cost_estimate=cost,
    )(x2, su_p, vt_p, bias2)

    return out.reshape(orig_shape[:-1] + (nf,))


if __name__ == "__main__":
    # Small shapes consistent with the module: GPT-2-style Conv1D with
    # nx (in features) = 32, nf (out features) = 32, truncated to rank = 8,
    # applied to x of shape (batch=2, seq=8, nx=32).
    batch, seq, nx, nf, rank = 2, 8, 32, 32, 8

    key = jax.random.PRNGKey(0)
    k_w, k_b, k_x = jax.random.split(key, 3)

    weight = jax.random.normal(k_w, (nx, nf), dtype=jnp.float32) * 0.05
    bias = jax.random.normal(k_b, (nf,), dtype=jnp.float32) * 0.05

    # Mirror SVDConv1D.__init__: truncated SVD of the weight (one-time setup,
    # done host-side in numpy -- not part of the hot forward path).
    # TODO(synk): the SVD factorization itself is __init__-time parameter prep,
    # not a forward-pass op, so it is not implemented as a Pallas kernel.
    U, S, Vh = np.linalg.svd(np.asarray(weight), full_matrices=False)
    U = U[:, :rank]                       # (nx, r)
    S = S[:rank]                          # (r,)
    V = Vh.T[:, :rank]                    # (nf, r)  -- torch.svd's V convention
    precomputed_SU = jnp.asarray(U @ np.diag(S), dtype=jnp.float32)   # (nx, r)
    V = jnp.asarray(V, dtype=jnp.float32)                             # (nf, r)

    # One-time weight-side prep (pad rank, transpose, bf16 cast).
    su_p, vt_p, bias2 = prepare_svd_conv1d_params(precomputed_SU, V, bias)

    x = jax.random.normal(k_x, (batch, seq, nx), dtype=jnp.float32)

    y = svd_conv1d(x, su_p, vt_p, bias2)
    y = jax.block_until_ready(y)

    # Reference (plain f32 JAX) check of the forward semantics.  Tolerance
    # loosened because the kernel computes the matmuls in bf16 (f32 accum).
    x2 = x.reshape(-1, nx)
    y_ref = ((x2 @ precomputed_SU) @ V.T + bias).reshape(batch, seq, nf)
    assert y.shape == (batch, seq, nf)
    np.testing.assert_allclose(np.asarray(y), np.asarray(y_ref),
                               rtol=2e-2, atol=2e-2)

    print("KERNEL_OK")
</pallas_src>

<mosaic_0001>
module attributes {stable_mosaic.version = 11 : i64} {
  func.func @_svd_conv1d_kernel(%arg0: i32, %arg1: i32, %arg2: memref<8x32xf32, #tpu.memory_space<vmem>>, %arg3: memref<32x128xbf16, #tpu.memory_space<vmem>>, %arg4: memref<128x32xbf16, #tpu.memory_space<vmem>>, %arg5: memref<1x32xf32, #tpu.memory_space<vmem>>, %arg6: memref<8x32xf32, #tpu.memory_space<vmem>>, %arg7: memref<8x128xf32, #tpu.memory_space<vmem>>) attributes {dimension_semantics = [#tpu.dimension_semantics<parallel>, #tpu.dimension_semantics<arbitrary>], iteration_bounds = array<i64: 2, 1>, scalar_prefetch = 0 : i64, scratch_operands = 1 : i64, tpu.core_type = #tpu.core_type<tc>, window_params = [{transform_indices = @transform_0, window_bounds = array<i64: 8, 32>}, {pipeline_mode = #tpu.pipeline_mode<synchronous>, transform_indices = @transform_1, window_bounds = array<i64: 32, 128>}, {transform_indices = @transform_2, window_bounds = array<i64: 128, 32>}, {transform_indices = @transform_3, window_bounds = array<i64: 1, 32>}, {transform_indices = @transform_4, window_bounds = array<i64: 8, 32>}]} {
    %c0_i32 = arith.constant 0 : i32
    %0 = arith.cmpi eq, %arg1, %c0_i32 : i32
    %1 = arith.extui %0 : i1 to i32
    %c0_i32_0 = arith.constant 0 : i32
    %2 = arith.cmpi ne, %1, %c0_i32_0 : i32
    scf.if %2 {
      %c0_8 = arith.constant 0 : index
      %c0_9 = arith.constant 0 : index
      %11 = vector.load %arg2[%c0_8, %c0_9] : memref<8x32xf32, #tpu.memory_space<vmem>>, vector<8x32xf32>
      %12 = arith.truncf %11 : vector<8x32xf32> to vector<8x32xbf16>
      %c0_10 = arith.constant 0 : index
      %c0_11 = arith.constant 0 : index
      %13 = vector.load %arg3[%c0_10, %c0_11] : memref<32x128xbf16, #tpu.memory_space<vmem>>, vector<32x128xbf16>
      %cst_12 = arith.constant dense<0.000000e+00> : vector<8x128xf32>
      %14 = tpu.matmul %12, %13, %cst_12 {dimension_numbers = #tpu.dot_dimension_numbers<[1], [0], [0], [1], [0, 0, 1, 1], [], []>} : vector<8x32xbf16>, vector<32x128xbf16>, vector<8x128xf32> -> vector<8x128xf32>
      %c0_13 = arith.constant 0 : index
      %c0_14 = arith.constant 0 : index
      %15 = vector.load %arg7[%c0_13, %c0_14] : memref<8x128xf32, #tpu.memory_space<vmem>>, vector<8x128xf32>
      tpu.vector_store %arg7[%c0_13, %c0_14], %14 {strides = array<i32>} : memref<8x128xf32, #tpu.memory_space<vmem>>, vector<8x128xf32>,
    } else {
    }
    %c0 = arith.constant 0 : index
    %c0_1 = arith.constant 0 : index
    %3 = vector.load %arg7[%c0, %c0_1] : memref<8x128xf32, #tpu.memory_space<vmem>>, vector<8x128xf32>
    %4 = arith.truncf %3 : vector<8x128xf32> to vector<8x128xbf16>
    %c0_2 = arith.constant 0 : index
    %c0_3 = arith.constant 0 : index
    %5 = vector.load %arg4[%c0_2, %c0_3] : memref<128x32xbf16, #tpu.memory_space<vmem>>, vector<128x32xbf16>
    %cst = arith.constant dense<0.000000e+00> : vector<8x32xf32>
    %6 = tpu.matmul %4, %5, %cst {dimension_numbers = #tpu.dot_dimension_numbers<[1], [0], [0], [1], [0, 0, 1, 1], [], []>} : vector<8x128xbf16>, vector<128x32xbf16>, vector<8x32xf32> -> vector<8x32xf32>
    %c0_4 = arith.constant 0 : index
    %c0_5 = arith.constant 0 : index
    %7 = vector.load %arg5[%c0_4, %c0_5] : memref<1x32xf32, #tpu.memory_space<vmem>>, vector<1x32xf32>
    %8 = vector.broadcast %7 : vector<1x32xf32> to vector<8x32xf32>
    %9 = arith.addf %6, %8 : vector<8x32xf32>
    %c0_6 = arith.constant 0 : index
    %c0_7 = arith.constant 0 : index
    %10 = vector.load %arg6[%c0_6, %c0_7] : memref<8x32xf32, #tpu.memory_space<vmem>>, vector<8x32xf32>
    tpu.vector_store %arg6[%c0_6, %c0_7], %9 {strides = array<i32>} : memref<8x32xf32, #tpu.memory_space<vmem>>, vector<8x32xf32>,
    return
  }
  func.func @transform_0(%arg0: i32, %arg1: i32) -> (i32, i32) {
    %c0_i32 = arith.constant 0 : i32
    %c0_i32_0 = arith.constant 0 : i32
    return %arg0, %c0_i32 : i32, i32
  }
  func.func @transform_1(%arg0: i32, %arg1: i32) -> (i32, i32) {
    %c0_i32 = arith.constant 0 : i32
    %c0_i32_0 = arith.constant 0 : i32
    %c0_i32_1 = arith.constant 0 : i32
    return %c0_i32, %c0_i32_0 : i32, i32
  }
  func.func @transform_2(%arg0: i32, %arg1: i32) -> (i32, i32) {
    %c0_i32 = arith.constant 0 : i32
    %c0_i32_0 = arith.constant 0 : i32
    return %c0_i32, %arg1 : i32, i32
  }
  func.func @transform_3(%arg0: i32, %arg1: i32) -> (i32, i32) {
    %c0_i32 = arith.constant 0 : i32
    %c0_i32_0 = arith.constant 0 : i32
    return %c0_i32, %arg1 : i32, i32
  }
  func.func @transform_4(%arg0: i32, %arg1: i32) -> (i32, i32) {
    %c0_i32 = arith.constant 0 : i32
    return %arg0, %arg1 : i32, i32
  }
}

</mosaic_0001>

<llo_original>
// kernel: tpu_custom_call.1
$region0: #{tpu_custom_call.1}
  #allocation0 [shape = 'u32[]', space=smem, size = 0x4, offset = 0x4, fixed_abs, tag = 'smem constant byte address 0x4 - core index']
  #allocation1 [shape = 'u32[144,128]{1,0:T(1,128)}', space=vmem, size = 0x12000, scoped, tag = 'internal scratch']
  #allocation2 [shape = 'f32[8,128]{1,0:T(8,128)}', space=vmem, size = 0x1000, scoped, tag = 'scratch operand']
  %s0 = inlined_call_operand.vmem [shape: f32[16,32], index: 0, kind: input, shape index: {}]
  %s1 = inlined_call_operand.vmem [shape: bf16[32,128], index: 1, kind: input, shape index: {}]
  %s2 = inlined_call_operand.vmem [shape: bf16[128,32], index: 2, kind: input, shape index: {}]
  %s3 = inlined_call_operand.vmem [shape: f32[1,32], index: 3, kind: input, shape index: {}]
  %s4 = inlined_call_operand.hbm [shape: f32[16,32], index: 4, kind: output, shape index: {}]
  %s5 = sld [smem:[#allocation0]]
  $region53: #{tpu_custom_call.1} parent=0
    _
  %s7 = ssub.s32 1, %s5
  %s8 = scalar_select 0, %s7, %s5
  $region1: #{tpu_custom_call.1} parent=0
    #allocation3 [shape = 'u8[8192]{0}', space=vmem, size = 0x2000, scoped, tag = 'output window, operand 0']
    #allocation4 [shape = 's32[2]{0}', space=sflag, size = 0x8, scoped, tag = 'scoped memory for tpu_custom_call.1']
    %9 = vsyncpa [#allocation4], 0
    %s10 = scalar_lea.sflag [#allocation4], 1
    %11 = vsyncpa %s10, 0
    loop: start=0, step=1, limit=4
    $region2: #{tpu_custom_call.1} parent=1 // loop_pre_header
      _
    $region3: #{tpu_custom_call.1} parent=1 // loop_header
      %s13 = sphi 0, %s17
      %p14 = scmp.ge.s32.totalorder %s13, 4
      %s20 = sphi 0, %s32
      %s21 = sphi 0, %s28
      %s22 = sphi 0, %s20
      %s23 = sphi 0, %s21
      %s24 = sphi 0, %s22
      %s25 = sphi 0, %s23
      %s35 = sphi 0, %s37
      %s38 = sphi 0, %s35
      %s39 = sphi 0, %s38
      %s55 = sphi 0, %s39
      %s59 = sphi 0, %s59
      %s61 = sphi 0, %s59
      %s62 = sphi 0, %s61
      %s76 = sphi 0, %s62
      %s82 = sphi 0, %s84
      %s85 = sphi 0, %s82
      %s86 = sphi 0, %s85
      %s102 = sphi 0, %s86
      %s108 = sphi 0, %s110
      %s111 = sphi 0, %s108
      %s112 = sphi 0, %s111
      %s128 = sphi 0, %s112
      %s136 = sphi 0, %s138
      %s139 = sphi 0, %s136
      %s140 = sphi 0, %s139
      %s156 = sphi 0, %s140
    $region4: #{tpu_custom_call.1} parent=1 // loop_header_branch
      %16 = sbr.rel (%p14) target = $region8
    $region5: #{tpu_custom_call.1} parent=1 // loop_body
      %s18 = ssub.s32 %s13, 1
      %s19 = ssub.s32 %s13, 2
      %s26 = sadd.s32 1, %s21
      %p27 = scmp.ge.s32.totalorder %s26, 1
      %s28 = scalar_select %p27, 0, %s26
      %s29 = sadd.s32 1, %s20
      %s30 = scalar_select %p27, %s29, %s20
      %p31 = scmp.ge.s32.totalorder %s30, 2
      %s32 = scalar_select %p31, 0, %s30
      %s33 = ssub.s32 %s20, %s32
      %p34 = scmp.eq.s32.totalorder %s33, 0
      %s36 = sadd.s32 %s35, 1
      %s37 = scalar_select %p34, %s35, %s36
      %p40 = pneg %p34
      %p41 = scmp.eq.s32.totalorder %s13, 1
      %p42 = por %p40, %p41
      %p43 = scmp.ne.s32.totalorder %s35, %s38
      %p44 = scmp.eq.s32.totalorder %s13, 0
      %p45 = por %p43, %p44
      %p46 = scmp.ne.s32.totalorder %s35, %s38
      %p47 = scmp.eq.s32.totalorder %s18, 1
      %p48 = por %p46, %p47
      %p49 = scmp.ne.s32.totalorder %s38, %s39
      %p50 = scmp.eq.s32.totalorder %s18, 0
      %p51 = por %p49, %p50
      %p52 = scmp.ne.s32.totalorder %s38, %s39
      %p53 = scmp.eq.s32.totalorder %s19, 1
      %p54 = por %p52, %p53
      %p56 = scmp.ne.s32.totalorder %s39, %s55
      %p57 = scmp.eq.s32.totalorder %s19, 0
      %p58 = por %p56, %p57
      %s60 = sadd.s32 %s59, 1
      %p63 = scmp.eq.s32.totalorder %s13, 1
      %p64 = scmp.ne.s32.totalorder %s59, %s61
      %p65 = scmp.eq.s32.totalorder %s13, 0
      %p66 = por %p64, %p65
      %p67 = scmp.ne.s32.totalorder %s59, %s61
      %p68 = scmp.eq.s32.totalorder %s18, 1
      %p69 = por %p67, %p68
      %p70 = scmp.ne.s32.totalorder %s61, %s62
      %p71 = scmp.eq.s32.totalorder %s18, 0
      %p72 = por %p70, %p71
      %p73 = scmp.ne.s32.totalorder %s61, %s62
      %p74 = scmp.eq.s32.totalorder %s19, 1
      %p75 = por %p73, %p74
      %p77 = scmp.ne.s32.totalorder %s62, %s76
      %p78 = scmp.eq.s32.totalorder %s19, 0
      %p79 = por %p77, %p78
      %s80 = ssub.s32 %s21, %s28
      %p81 = scmp.eq.s32.totalorder %s80, 0
      %s83 = sadd.s32 %s82, 1
      %s84 = scalar_select %p81, %s82, %s83
      %p87 = pneg %p81
      %p88 = scmp.eq.s32.totalorder %s13, 1
      %p89 = por %p87, %p88
      %p90 = scmp.ne.s32.totalorder %s82, %s85
      %p91 = scmp.eq.s32.totalorder %s13, 0
      %p92 = por %p90, %p91
      %p93 = scmp.ne.s32.totalorder %s82, %s85
      %p94 = scmp.eq.s32.totalorder %s18, 1
      %p95 = por %p93, %p94
      %p96 = scmp.ne.s32.totalorder %s85, %s86
      %p97 = scmp.eq.s32.totalorder %s18, 0
      %p98 = por %p96, %p97
      %p99 = scmp.ne.s32.totalorder %s85, %s86
      %p100 = scmp.eq.s32.totalorder %s19, 1
      %p101 = por %p99, %p100
      %p103 = scmp.ne.s32.totalorder %s86, %s102
      %p104 = scmp.eq.s32.totalorder %s19, 0
      %p105 = por %p103, %p104
      %s106 = ssub.s32 %s21, %s28
      %p107 = scmp.eq.s32.totalorder %s106, 0
      %s109 = sadd.s32 %s108, 1
      %s110 = scalar_select %p107, %s108, %s109
      %p113 = pneg %p107
      %p114 = scmp.eq.s32.totalorder %s13, 1
      %p115 = por %p113, %p114
      %p116 = scmp.ne.s32.totalorder %s108, %s111
      %p117 = scmp.eq.s32.totalorder %s13, 0
      %p118 = por %p116, %p117
      %p119 = scmp.ne.s32.totalorder %s108, %s111
      %p120 = scmp.eq.s32.totalorder %s18, 1
      %p121 = por %p119, %p120
      %p122 = scmp.ne.s32.totalorder %s111, %s112
      %p123 = scmp.eq.s32.totalorder %s18, 0
      %p124 = por %p122, %p123
      %p125 = scmp.ne.s32.totalorder %s111, %s112
      %p126 = scmp.eq.s32.totalorder %s19, 1
      %p127 = por %p125, %p126
      %p129 = scmp.ne.s32.totalorder %s112, %s128
      %p130 = scmp.eq.s32.totalorder %s19, 0
      %p131 = por %p129, %p130
      %s132 = ssub.s32 %s20, %s32
      %s133 = ssub.s32 %s21, %s28
      %s134 = sor.u32 %s132, %s133
      %p135 = scmp.eq.s32.totalorder %s134, 0
      %s137 = sadd.s32 %s136, 1
      %s138 = scalar_select %p135, %s136, %s137
      %p141 = pneg %p135
      %p142 = scmp.eq.s32.totalorder %s13, 1
      %p143 = por %p141, %p142
      %p144 = scmp.ne.s32.totalorder %s136, %s139
      %p145 = scmp.eq.s32.totalorder %s13, 0
      %p146 = por %p144, %p145
      %p147 = scmp.ne.s32.totalorder %s136, %s139
      %p148 = scmp.eq.s32.totalorder %s18, 1
      %p149 = por %p147, %p148
      %p150 = scmp.ne.s32.totalorder %s139, %s140
      %p151 = scmp.eq.s32.totalorder %s18, 0
      %p152 = por %p150, %p151
      %p153 = scmp.ne.s32.totalorder %s139, %s140
      %p154 = scmp.eq.s32.totalorder %s19, 1
      %p155 = por %p153, %p154
      %p157 = scmp.ne.s32.totalorder %s140, %s156
      %p158 = scmp.eq.s32.totalorder %s19, 0
      %p159 = por %p157, %p158
      %p160 = scmp.le.s32.totalorder 1, %s13
      %p161 = scmp.lt.s32.totalorder %s13, 3
      %p162 = pnand %p160, %p161
      %p163 = pneg %p162
      // Predicated region
      $region9: #{tpu_custom_call.1} parent=5 // pred_check
        _
      $region10: #{tpu_custom_call.1} parent=5 // pred_check_branch
        %165 = sbr.rel (%p162) target = $region12
      $region11: #{tpu_custom_call.1} parent=5 // pred_region
        %s166 = ssub.s32 %s13, 1
        // Predicated region
        $region13: #{tpu_custom_call.1} parent=11 // pred_check
          %p167 = pneg %p72
        $region14: #{tpu_custom_call.1} parent=11 // pred_check_branch
          %169 = sbr.rel (%p167) target = $region16
        $region15: #{tpu_custom_call.1} parent=11 // pred_region
          _
        $region16: #{tpu_custom_call.1} parent=11 // pred_fallthru
          _
        // Predicated region
        $region17: #{tpu_custom_call.1} parent=11 // pred_check
          %p170 = pneg %p98
        $region18: #{tpu_custom_call.1} parent=11 // pred_check_branch
          %172 = sbr.rel (%p170) target = $region20
        $region19: #{tpu_custom_call.1} parent=11 // pred_region
          %p173 = scmp.lt.s32.totalorder %s23, 0
          %s174 = scalar_select %p173, %s23, 0
          %s175 = smul.addr %s174, 4
          %s176 = scalar_lea.vmem %s2, %s175
        $region20: #{tpu_custom_call.1} parent=11 // pred_fallthru
          _
        // Predicated region
        $region21: #{tpu_custom_call.1} parent=11 // pred_check
          %p177 = pneg %p124
        $region22: #{tpu_custom_call.1} parent=11 // pred_check_branch
          %179 = sbr.rel (%p177) target = $region24
        $region23: #{tpu_custom_call.1} parent=11 // pred_region
          %p180 = scmp.lt.s32.totalorder %s23, 0
          %s181 = scalar_select %p180, %s23, 0
          %s182 = scalar_lea.vmem %s3, %s181
        $region24: #{tpu_custom_call.1} parent=11 // pred_fallthru
          _
      $region12: #{tpu_custom_call.1} parent=5 // pred_fallthru
        _
      %p183 = scmp.lt.s32.totalorder %s13, 2
      // Predicated region
      $region25: #{tpu_custom_call.1} parent=5 // pred_check
        %p184 = pneg %p183
      $region26: #{tpu_custom_call.1} parent=5 // pred_check_branch
        %186 = sbr.rel (%p184) target = $region28
      $region27: #{tpu_custom_call.1} parent=5 // pred_region
        // Predicated region
        $region29: #{tpu_custom_call.1} parent=27 // pred_check
          %p187 = pneg %p45
        $region30: #{tpu_custom_call.1} parent=27 // pred_check_branch
          %189 = sbr.rel (%p187) target = $region32
        $region31: #{tpu_custom_call.1} parent=27 // pred_region
          %p190 = scmp.lt.s32.totalorder %s20, 1
          %s191 = scalar_select %p190, %s20, 1
          %s192 = smul.addr %s191, 8
          %s193 = scalar_lea.vmem %s0, %s192
        $region32: #{tpu_custom_call.1} parent=27 // pred_fallthru
          _
      $region28: #{tpu_custom_call.1} parent=5 // pred_fallthru
        _
      %p194 = scmp.le.s32.totalorder 1, %s13
      %p195 = scmp.lt.s32.totalorder %s13, 3
      %p196 = pnand %p194, %p195
      %p197 = pneg %p196
      // Predicated region
      $region33: #{tpu_custom_call.1} parent=5 // pred_check
        _
      $region34: #{tpu_custom_call.1} parent=5 // pred_check_branch
        %199 = sbr.rel (%p196) target = $region36
      $region35: #{tpu_custom_call.1} parent=5 // pred_region
        %s200 = ssub.s32 %s13, 1
        %p201 = scmp.lt.s32.totalorder %s22, 1
        %s202 = scalar_select %p201, %s22, 1
        %s203 = smul.addr %s202, 8
        %s204 = scalar_lea.vmem %s0, %s203
        %p205 = pneg %p51
        %p206 = pneg %p48
        %p207 = pneg %p72
        %p208 = pneg %p69
        %p209 = scmp.lt.s32.totalorder %s23, 0
        %s210 = scalar_select %p209, %s23, 0
        %s211 = smul.addr %s210, 4
        %s212 = scalar_lea.vmem %s2, %s211
        %p213 = pneg %p98
        %p214 = pneg %p95
        %p215 = scmp.lt.s32.totalorder %s23, 0
        %s216 = scalar_select %p215, %s23, 0
        %s217 = scalar_lea.vmem %s3, %s216
        %p218 = pneg %p124
        %p219 = pneg %p121
        %p220 = pneg %p152
        %p221 = pneg %p149
        %s222 = sand.u32 %s139, 1
        %s223 = scalar_lea.sflag [#allocation4], %s222
        %s224 = sand.u32 %s139, 1
        %s225 = smul.addr %s224, 8
        %s226 = scalar_lea.vmem [#allocation3], %s225
        %p227 = scmp.lt.s32.totalorder %s22, 1
        %s228 = scalar_select %p227, %s22, 1
        %s229 = smul.addr %s228, 8
        %s230 = scalar_lea.vmem %s0, %s229
        %p231 = scmp.lt.s32.totalorder %s23, 0
        %s232 = scalar_select %p231, %s23, 0
        %s233 = smul.addr %s232, 4
        %s234 = scalar_lea.vmem %s2, %s233
        %p235 = scmp.lt.s32.totalorder %s23, 0
        %s236 = scalar_select %p235, %s23, 0
        %s237 = scalar_lea.vmem %s3, %s236
        %p239 = scmp.eq.s32.totalorder %s23, 0
        // Predicated region
        $region37: #{tpu_custom_call.1} parent=35 // pred_check
          %p240 = pneg %p239
        $region38: #{tpu_custom_call.1} parent=35 // pred_check_branch
          %242 = sbr.rel (%p240) target = $region40
        $region39: #{tpu_custom_call.1} parent=35 // pred_region
          %v243 = vld [vmem:[%s230] sm:$0xff]
          %v244 = vpack.c.bf16 %v243, %v243
          %v245 = vld [vmem:[%s1] sm:$0xf]
          %v246 = vld [vmem:[%s1 + $0x4] sm:$0xf]
          %v247 = vld [vmem:[%s1 + $0x8] sm:$0xf]
          %v248 = vld [vmem:[%s1 + $0xc] sm:$0xf]
          %v253 = vunpack.c.l.b16 %v245
          %v254 = vunpack.c.l.b16 %v246
          %v255 = vunpack.c.l.b16 %v247
          %v256 = vunpack.c.l.b16 %v248
          %v257 = vpack.c.b16 %v254, %v253
          %v258 = vpack.c.b16 %v256, %v255
          %vm261 = vcmask 261120
          %v263 = vsel %vm261, %v244, 0
          %265 = vmatprep.subr.bf16.mxu0 0
          %266 = vmatpush1.bf16.msra.mxu0 %v257
          %267 = vmatprep.subr.bf16.mxu0 0
          %268 = vmatpush1.bf16.msra.mxu0 %v258
          %269 = vmatprep.subr.bf16.mxu0 0
          %270 = vmatpush1.bf16.msra.mxu0 0
          %271 = vmatprep.subr.bf16.mxu0 0
          %272 = vmatpush1.bf16.msra.mxu0 0
          %273 = vmatprep.subr.bf16.mxu0 0
          %274 = vmatpush1.bf16.msra.mxu0 0
          %275 = vmatprep.subr.bf16.mxu0 0
          %276 = vmatpush1.bf16.msra.mxu0 0
          %277 = vmatprep.subr.bf16.mxu0 0
          %278 = vmatpush1.bf16.msra.mxu0 0
          %279 = vmatprep.subr.bf16.mxu0 0
          %280 = vmatpush1.bf16.msra.mxu0 0
          %281 = vmatprep.subr.bf16.mxu0 0
          %282 = vmatpush1.bf16.msra.mxu0 0
          %283 = vmatprep.subr.bf16.mxu0 0
          %284 = vmatpush1.bf16.msra.mxu0 0
          %285 = vmatprep.subr.bf16.mxu0 0
          %286 = vmatpush1.bf16.msra.mxu0 0
          %287 = vmatprep.subr.bf16.mxu0 0
          %288 = vmatpush1.bf16.msra.mxu0 0
          %289 = vmatprep.subr.bf16.mxu0 0
          %290 = vmatpush1.bf16.msra.mxu0 0
          %291 = vmatprep.subr.bf16.mxu0 0
          %292 = vmatpush1.bf16.msra.mxu0 0
          %293 = vmatprep.subr.bf16.mxu0 0
          %294 = vmatpush1.bf16.msra.mxu0 0
          %295 = vmatprep.subr.bf16.mxu0 0
          %296 = vmatpush1.bf16.msra.mxu0 0
          %297 = vmatprep.mubr.bf16.mxu0 0
          %298 = vmatmul.mubr.bf16.gmra.mrb[0].mxu0 %v263
          %v299 = vpop.f32.mrb[0].mxu0
          %v300 = vadd.f32 0.0, %v299
          %v301 = vpop.f32.mrb[0].mxu0
          %v302 = vpop.f32.mrb[0].mxu0
          %v303 = vpop.f32.mrb[0].mxu0
          %304 = vdwg.mxu0
          %305 = vst [vmem:[#allocation2] sm:$0xff] %v300
        $region40: #{tpu_custom_call.1} parent=35 // pred_fallthru
          _
        %v306 = vld [vmem:[#allocation2] sm:$0xff]
        %v307 = vpack.c.bf16 %v306, %v306
        %v308 = vld [vmem:[%s234] sm:$0xf]
        %v309 = vld [vmem:[%s234 + $0x4] sm:$0xf]
        %v310 = vld [vmem:[%s234 + $0x8] sm:$0xf]
        %v311 = vld [vmem:[%s234 + $0xc] sm:$0xf]
        %v312 = vld [vmem:[%s234 + $0x10] sm:$0xf]
        %v313 = vld [vmem:[%s234 + $0x14] sm:$0xf]
        %v314 = vld [vmem:[%s234 + $0x18] sm:$0xf]
        %v315 = vld [vmem:[%s234 + $0x1c] sm:$0xf]
        %v316 = vld [vmem:[%s234 + $0x20] sm:$0xf]
        %v317 = vld [vmem:[%s234 + $0x24] sm:$0xf]
        %v318 = vld [vmem:[%s234 + $0x28] sm:$0xf]
        %v319 = vld [vmem:[%s234 + $0x2c] sm:$0xf]
        %v320 = vld [vmem:[%s234 + $0x30] sm:$0xf]
        %v321 = vld [vmem:[%s234 + $0x34] sm:$0xf]
        %v322 = vld [vmem:[%s234 + $0x38] sm:$0xf]
        %v323 = vld [vmem:[%s234 + $0x3c] sm:$0xf]
        %v324 = vld [vmem:[%s237] sm:$0x1]
        %v326 = vlaneseq
        %v327 = vshrl.u32 %v326, 7
        %v328 = vsub.s32 0, %v327
        %v329 = vrot.slane %v324, %v328
        %v347 = vunpack.c.l.b16 %v308
        %v348 = vunpack.c.l.b16 %v309
        %v349 = vunpack.c.l.b16 %v310
        %v350 = vunpack.c.l.b16 %v311
        %v351 = vunpack.c.l.b16 %v312
        %v352 = vunpack.c.l.b16 %v313
        %v353 = vunpack.c.l.b16 %v314
        %v354 = vunpack.c.l.b16 %v315
        %v355 = vunpack.c.l.b16 %v316
        %v356 = vunpack.c.l.b16 %v317
        %v357 = vunpack.c.l.b16 %v318
        %v358 = vunpack.c.l.b16 %v319
        %v359 = vunpack.c.l.b16 %v320
        %v360 = vunpack.c.l.b16 %v321
        %v361 = vunpack.c.l.b16 %v322
        %v362 = vunpack.c.l.b16 %v323
        %v363 = vpack.c.b16 %v348, %v347
        %v364 = vpack.c.b16 %v350, %v349
        %v365 = vpack.c.b16 %v352, %v351
        %v366 = vpack.c.b16 %v354, %v353
        %v367 = vpack.c.b16 %v356, %v355
        %v368 = vpack.c.b16 %v358, %v357
        %v369 = vpack.c.b16 %v360, %v359
        %v370 = vpack.c.b16 %v362, %v361
        %379 = vmatprep.subr.bf16.mxu0 0
        %380 = vmatpush1.bf16.msra.mxu0 %v363
        %381 = vmatprep.subr.bf16.mxu0 0
        %382 = vmatpush1.bf16.msra.mxu0 %v364
        %383 = vmatprep.subr.bf16.mxu0 0
        %384 = vmatpush1.bf16.msra.mxu0 %v365
        %385 = vmatprep.subr.bf16.mxu0 0
        %386 = vmatpush1.bf16.msra.mxu0 %v366
        %387 = vmatprep.subr.bf16.mxu0 0
        %388 = vmatpush1.bf16.msra.mxu0 %v367
        %389 = vmatprep.subr.bf16.mxu0 0
        %390 = vmatpush1.bf16.msra.mxu0 %v368
        %391 = vmatprep.subr.bf16.mxu0 0
        %392 = vmatpush1.bf16.msra.mxu0 %v369
        %393 = vmatprep.subr.bf16.mxu0 0
        %394 = vmatpush1.bf16.msra.mxu0 %v370
        %395 = vmatprep.subr.bf16.mxu0 0
        %396 = vmatpush1.bf16.msra.mxu0 0
        %397 = vmatprep.subr.bf16.mxu0 0
        %398 = vmatpush1.bf16.msra.mxu0 0
        %399 = vmatprep.subr.bf16.mxu0 0
        %400 = vmatpush1.bf16.msra.mxu0 0
        %401 = vmatprep.subr.bf16.mxu0 0
        %402 = vmatpush1.bf16.msra.mxu0 0
        %403 = vmatprep.subr.bf16.mxu0 0
        %404 = vmatpush1.bf16.msra.mxu0 0
        %405 = vmatprep.subr.bf16.mxu0 0
        %406 = vmatpush1.bf16.msra.mxu0 0
        %407 = vmatprep.subr.bf16.mxu0 0
        %408 = vmatpush1.bf16.msra.mxu0 0
        %409 = vmatprep.subr.bf16.mxu0 0
        %410 = vmatpush1.bf16.msra.mxu0 0
        %411 = vmatprep.mubr.bf16.mxu0 0
        %412 = vmatmul.mubr.bf16.gmra.mrb[0].mxu0 %v307
        %v413 = vpop.f32.mrb[0].mxu0
        %v414 = vadd.f32 %v329, %v413
        %v415 = vpop.f32.mrb[0].mxu0
        %v416 = vpop.f32.mrb[0].mxu0
        %v417 = vpop.f32.mrb[0].mxu0
        %418 = vdwg.mxu0
        %vm419 = vcmask 261120
        %420 = vst.msk [vmem:[%s226] sm:$0xff] %vm419, %v414
        %s421 = sand.u32 %s139, 1
        %s422 = scalar_lea.sflag [#allocation4], %s421
        %s423 = sand.u32 %s139, 1
        %s424 = smul.addr %s423, 8
        %s425 = scalar_lea.vmem [#allocation3], %s424
        // Predicated region
        $region41: #{tpu_custom_call.1} parent=35 // pred_check
          %p426 = pneg %p149
        $region42: #{tpu_custom_call.1} parent=35 // pred_check_branch
          %428 = sbr.rel (%p426) target = $region44
        $region43: #{tpu_custom_call.1} parent=35 // pred_region
          %s430 = ssub.s32 128, 128
          %431 = vsyncadd %s422, %s430
          %s432 = sadd.s32 %s23, %s22
          %s433 = smul.addr %s432, 128
          %s434 = scalar_lea.hbm %s4, %s433
          %s436 = sshll.u32 %s425, 4
          %s437 = int_to_ptr.vmem [resolvable:$true] %s436
          %439 = dma.vmem_to_hbm [thread:$0]  %s437, 128, %s434, %s422
        $region44: #{tpu_custom_call.1} parent=35 // pred_fallthru
          _
      $region36: #{tpu_custom_call.1} parent=5 // pred_fallthru
        _
      %p440 = scmp.le.s32.totalorder 2, %s13
      // Predicated region
      $region45: #{tpu_custom_call.1} parent=5 // pred_check
        %p441 = pneg %p440
      $region46: #{tpu_custom_call.1} parent=5 // pred_check_branch
        %443 = sbr.rel (%p441) target = $region48
      $region47: #{tpu_custom_call.1} parent=5 // pred_region
        %s444 = ssub.s32 %s13, 2
        // Predicated region
        $region49: #{tpu_custom_call.1} parent=47 // pred_check
          %p445 = pneg %p155
        $region50: #{tpu_custom_call.1} parent=47 // pred_check_branch
          %447 = sbr.rel (%p445) target = $region52
        $region51: #{tpu_custom_call.1} parent=47 // pred_region
          %s448 = sand.u32 %s140, 1
          %s449 = scalar_lea.sflag [#allocation4], %s448
          %s450 = sand.u32 %s140, 1
          %s451 = smul.addr %s450, 8
          %s452 = scalar_lea.vmem [#allocation3], %s451
          %453 = dma.done %s449, 128
        $region52: #{tpu_custom_call.1} parent=47 // pred_fallthru
          _
      $region48: #{tpu_custom_call.1} parent=5 // pred_fallthru
        _
    $region6: #{tpu_custom_call.1} parent=1 // loop_footer
      %s17 = sadd.s32 1, %s13
    $region7: #{tpu_custom_call.1} parent=1 // loop_footer_branch
      %12 = sbr.rel target = $region3
    $region8: #{tpu_custom_call.1} parent=1 // loop_exit
      _
    %454 = vsyncpa [#allocation4], 1
    %s455 = scalar_lea.sflag [#allocation4], 1
    %456 = vsyncpa %s455, 1

</llo_original>
